<compile_context>
chip_gen: v5e
topology: v5e:2x2
jax: 0.10.0
libtpu: 0.0.40
codegen_flags: <defaults>
</compile_context>

<pallas_src>
import functools

import jax
import jax.numpy as jnp
from jax.experimental import pallas as pl
from jax.experimental.pallas import tpu as pltpu

LANES = 128


def _cdiv(a, b):
    return -(-a // b)


def _round_up(v, m):
    return ((v + m - 1) // m) * m


@functools.lru_cache(maxsize=None)
def _block_cap_bytes():
    """Per-generation cap on bytes of ONE input block (per input, per buffer).

    v5e: 1 MiB (0.8 TB/s HBM already amortizes per-step overhead; small VMEM).
    v6e: 2 MiB.  v7x / unknown-newer (3.2 TB/s HBM): 4 MiB.  Older gens: 512 KiB.
    """
    kind = ""
    try:
        kind = jax.devices()[0].device_kind.lower()
    except Exception:
        pass
    if ("v2" in kind) or ("v3" in kind):
        cap = 512 << 10
    elif "v5" in kind:
        cap = 1 << 20
    elif "v6" in kind:
        cap = 2 << 20
    else:
        cap = 4 << 20
    try:
        # Clamp against physical VMEM (2 inputs x 2 buffers must fit easily).
        vmem = pltpu.get_tpu_info().vmem_capacity_bytes
        cap = min(cap, max(vmem // 16, 256 << 10))
    except Exception:
        pass
    return cap


def _choose_tile_rows(rows, itemsize, override=None):
    """Pick the per-block row count (rows of 128 lanes) for `rows` total rows."""
    if override is not None:
        tr = int(override)
        if tr >= rows:
            return rows
        assert tr % 8 == 0, "tile_rows override must be a multiple of 8"
        return tr
    cap_rows = max(_block_cap_bytes() // (LANES * itemsize), 256)
    cap_rows = _round_up(cap_rows, 16)
    if rows <= 64:
        return rows  # single tiny block; pipelining irrelevant
    if rows <= cap_rows:
        # Split into 2-4 blocks so the next block's DMA overlaps this compute.
        steps = 4 if rows >= 512 else 2
        tr = _round_up(_cdiv(rows, steps), 16)
        return rows if tr >= rows else tr
    return cap_rows


def _make_in_index_map(steps_per_core, nblocks, padded):
    if padded:
        def in_map(c, i):
            blk = c * steps_per_core + i
            # Clamp padded trailing steps to the last real block; their
            # contribution is skipped inside the kernel.
            return (jnp.minimum(blk, nblocks - 1), 0)
    else:
        def in_map(c, i):
            return (c * steps_per_core + i, 0)
    return in_map


def _make_nmse_kernel(tile_rows, acc_rows, nblocks, steps_per_core,
                      last_valid_rows, ragged, padded):
    def _row_reduce(a):
        # (tile_rows, LANES) -> (acc_rows, LANES).  When sublane-aligned this
        # is pure vreg adds on the VPU; the cross-lane reduce happens in JAX.
        if tile_rows == acc_rows:
            return a
        if acc_rows == 8:
            return a.reshape(-1, 8, LANES).sum(axis=0)
        return jnp.sum(a, axis=0, keepdims=True)

    def kernel(xhat_ref, x_ref, out_ref, pow_acc, mse_acc):
        i = pl.program_id(1)

        @pl.when(i == 0)
        def _():
            pow_acc[...] = jnp.zeros_like(pow_acc)
            mse_acc[...] = jnp.zeros_like(mse_acc)

        def accumulate(mask_rows):
            x = x_ref[...].astype(jnp.float32)
            xh = xhat_ref[...].astype(jnp.float32)
            d = x - xh
            xx = x * x
            dd = d * d
            if mask_rows:
                rid = jax.lax.broadcasted_iota(jnp.int32, (tile_rows, LANES), 0)
                valid = rid < last_valid_rows       # static constant compare
                xx = jnp.where(valid, xx, 0.0)
                dd = jnp.where(valid, dd, 0.0)
            pow_acc[...] += _row_reduce(xx)
            mse_acc[...] += _row_reduce(dd)

        if ragged or padded:
            blk = pl.program_id(0) * steps_per_core + i

            @pl.when(blk < nblocks - 1)   # bulk blocks: no mask ops at all
            def _():
                accumulate(mask_rows=False)

            @pl.when(blk == nblocks - 1)  # last real block; padded steps skip
            def _():
                accumulate(mask_rows=ragged)
        else:
            accumulate(mask_rows=False)

        @pl.when(i == steps_per_core - 1)
        def _():
            out_ref[0, 0, :, :] = pow_acc[...]
            out_ref[0, 1, :, :] = mse_acc[...]

    return kernel


@functools.partial(jax.jit, static_argnames=("reduction", "tile_rows_override"))
def nmse_loss(x_hat, x, reduction="mean", tile_rows_override=None):
    """Pallas TPU implementation of NMSELoss.forward(x_hat, x)."""
    assert x_hat.shape == x.shape
    # 'mean' and 'sum' over a 0-d value are both identities.
    del reduction

    n = x.size
    rows = n // LANES
    rem = n % LANES

    if rows == 0:
        # Sub-vreg input: a kernel launch is pure overhead.
        xf = x.astype(jnp.float32).reshape(-1)
        xhf = x_hat.astype(jnp.float32).reshape(-1)
        return jnp.sum((xf - xhf) ** 2) / jnp.sum(xf * xf)

    xf = x.reshape(-1)
    xhf = x_hat.reshape(-1)

    tail_pow = tail_mse = None
    if rem:
        # Rare: numel not a multiple of 128.  Handle the <128-element tail in
        # plain JAX (a handful of VPU ops) instead of jnp.pad-ing BOTH arrays.
        # TODO(synk): the prefix slice below may still copy the bulk through
        # HBM when rem != 0; common NN shapes (numel % 128 == 0) avoid it.
        main = rows * LANES
        xt = xf[main:].astype(jnp.float32)
        xht = xhf[main:].astype(jnp.float32)
        tail_pow = jnp.sum(xt * xt)
        tail_mse = jnp.sum((xt - xht) ** 2)
        xf = xf[:main]
        xhf = xhf[:main]

    x2 = xf.reshape(rows, LANES)
    xh2 = xhf.reshape(rows, LANES)

    itemsize = max(x.dtype.itemsize, x_hat.dtype.itemsize)
    tile_rows = _choose_tile_rows(rows, itemsize, tile_rows_override)
    acc_rows = 8 if tile_rows % 8 == 0 else 1

    nblocks = _cdiv(rows, tile_rows)
    ragged = (rows % tile_rows) != 0
    last_valid_rows = rows - (nblocks - 1) * tile_rows

    # Split blocks across (up to) 2 TensorCores via a leading "parallel" axis.
    # On 1-TC chips (v5e/v6e) this is just a serial outer loop of length 2.
    nc = 2 if nblocks >= 2 else 1
    steps_per_core = _cdiv(nblocks, nc)
    padded = nc * steps_per_core > nblocks

    in_map = _make_in_index_map(steps_per_core, nblocks, padded)
    kernel = _make_nmse_kernel(tile_rows, acc_rows, nblocks, steps_per_core,
                               last_valid_rows, ragged, padded)

    # 2 inputs x 2 pipeline buffers, plus headroom for accumulators/outputs.
    block_bytes = tile_rows * LANES * (x.dtype.itemsize + x_hat.dtype.itemsize)
    vmem_limit = int(max(2 * block_bytes + (2 << 20), 16 << 20))

    partials = pl.pallas_call(
        kernel,
        out_shape=jax.ShapeDtypeStruct((nc, 2, acc_rows, LANES), jnp.float32),
        grid_spec=pltpu.PrefetchScalarGridSpec(
            num_scalar_prefetch=0,
            grid=(nc, steps_per_core),
            in_specs=[
                pl.BlockSpec((tile_rows, LANES), in_map),
                pl.BlockSpec((tile_rows, LANES), in_map),
            ],
            out_specs=pl.BlockSpec((1, 2, acc_rows, LANES),
                                   lambda c, i: (c, 0, 0, 0)),
            scratch_shapes=[
                pltpu.VMEM((acc_rows, LANES), jnp.float32),  # power partials
                pltpu.VMEM((acc_rows, LANES), jnp.float32),  # mse partials
            ],
        ),
        compiler_params=pltpu.CompilerParams(
            dimension_semantics=("parallel", "arbitrary"),
            vmem_limit_bytes=vmem_limit,
        ),
    )(xh2, x2)

    power = jnp.sum(partials[:, 0])
    mse = jnp.sum(partials[:, 1])
    if rem:
        power = power + tail_pow
        mse = mse + tail_mse
    return mse / power


if __name__ == "__main__":
    key = jax.random.PRNGKey(0)
    keys = jax.random.split(key, 10)

    def ref_nmse(x_hat, x):
        xf = x.astype(jnp.float32)
        xh = x_hat.astype(jnp.float32)
        return jnp.sum((xf - xh) ** 2) / jnp.sum(xf * xf)

    # 1) Small NCHW input (the module's typical call): single-block path.
    x = jax.random.normal(keys[0], (2, 4, 16, 16), dtype=jnp.float32)
    x_hat = x + 0.1 * jax.random.normal(keys[1], (2, 4, 16, 16), dtype=jnp.float32)
    out = nmse_loss(x_hat, x, reduction="mean")
    jax.block_until_ready(out)
    assert jnp.allclose(out, ref_nmse(x_hat, x), rtol=1e-5, atol=1e-6), out

    # 2) Larger input: multi-block grid + 2-way core split.
    xb = jax.random.normal(keys[2], (4, 8, 96, 96), dtype=jnp.float32)
    xb_hat = xb + 0.05 * jax.random.normal(keys[3], (4, 8, 96, 96), dtype=jnp.float32)
    out2 = nmse_loss(xb_hat, xb, reduction="sum")
    jax.block_until_ready(out2)
    assert jnp.allclose(out2, ref_nmse(xb_hat, xb), rtol=1e-4, atol=1e-6), out2

    # 3) bf16 inputs stream in native dtype; widened to f32 in-kernel.
    out3 = nmse_loss(x_hat.astype(jnp.bfloat16), x.astype(jnp.bfloat16))
    jax.block_until_ready(out3)
    ref3 = ref_nmse(x_hat.astype(jnp.bfloat16), x.astype(jnp.bfloat16))
    assert jnp.allclose(out3, ref3, rtol=1e-5, atol=1e-6), (out3, ref3)

    # 4) numel % 128 != 0: kernel handles the bulk, plain-JAX handles the tail.
    xo = jax.random.normal(keys[4], (5, 7, 13), dtype=jnp.float32)
    xo_hat = xo + 0.1 * jax.random.normal(keys[5], (5, 7, 13), dtype=jnp.float32)
    out4 = nmse_loss(xo_hat, xo)
    jax.block_until_ready(out4)
    assert jnp.allclose(out4, ref_nmse(xo_hat, xo), rtol=1e-5, atol=1e-6), out4

    # 5) Ragged last block (100 rows -> two 64-row blocks, last has 36 valid).
    xr = jax.random.normal(keys[6], (4, 25, 128), dtype=jnp.float32)
    xr_hat = xr + 0.1 * jax.random.normal(keys[7], (4, 25, 128), dtype=jnp.float32)
    out5 = nmse_loss(xr_hat, xr)
    jax.block_until_ready(out5)
    assert jnp.allclose(out5, ref_nmse(xr_hat, xr), rtol=1e-5, atol=1e-6), out5

    # 6) Odd block count with the 2-core split (padded trailing step skipped).
    xp = jax.random.normal(keys[8], (2, 100, 128), dtype=jnp.float32)
    xp_hat = xp + 0.1 * jax.random.normal(keys[9], (2, 100, 128), dtype=jnp.float32)
    out6 = nmse_loss(xp_hat, xp, tile_rows_override=80)
    jax.block_until_ready(out6)
    assert jnp.allclose(out6, ref_nmse(xp_hat, xp), rtol=1e-5, atol=1e-6), out6

    print("KERNEL_OK")
</pallas_src>

<mosaic_0001>
module attributes {stable_mosaic.version = 11 : i64} {
  func.func @kernel(%arg0: i32, %arg1: i32, %arg2: memref<16x128xf32, #tpu.memory_space<vmem>>, %arg3: memref<16x128xf32, #tpu.memory_space<vmem>>, %arg4: memref<1x2x8x128xf32, #tpu.memory_space<vmem>>, %arg5: memref<8x128xf32, #tpu.memory_space<vmem>>, %arg6: memref<8x128xf32, #tpu.memory_space<vmem>>) attributes {dimension_semantics = [#tpu.dimension_semantics<parallel>, #tpu.dimension_semantics<arbitrary>], iteration_bounds = array<i64: 1, 1>, scalar_prefetch = 0 : i64, scratch_operands = 2 : i64, tpu.core_type = #tpu.core_type<tc>, window_params = [{transform_indices = @transform_0, window_bounds = array<i64: 16, 128>}, {transform_indices = @transform_1, window_bounds = array<i64: 16, 128>}, {transform_indices = @transform_2, window_bounds = array<i64: 1, 2, 8, 128>}]} {
    %c0_i32 = arith.constant 0 : i32
    %0 = arith.cmpi eq, %arg1, %c0_i32 : i32
    %1 = arith.extui %0 : i1 to i32
    %c0_i32_0 = arith.constant 0 : i32
    %2 = arith.cmpi ne, %1, %c0_i32_0 : i32
    scf.if %2 {
      %cst_15 = arith.constant 0.000000e+00 : f32
      %21 = vector.broadcast %cst_15 : f32 to vector<8x128xf32>
      %c0_16 = arith.constant 0 : index
      %c0_17 = arith.constant 0 : index
      %22 = vector.load %arg5[%c0_16, %c0_17] : memref<8x128xf32, #tpu.memory_space<vmem>>, vector<8x128xf32>
      tpu.vector_store %arg5[%c0_16, %c0_17], %21 {strides = array<i32>} : memref<8x128xf32, #tpu.memory_space<vmem>>, vector<8x128xf32>,
      %cst_18 = arith.constant 0.000000e+00 : f32
      %23 = vector.broadcast %cst_18 : f32 to vector<8x128xf32>
      %c0_19 = arith.constant 0 : index
      %c0_20 = arith.constant 0 : index
      %24 = vector.load %arg6[%c0_19, %c0_20] : memref<8x128xf32, #tpu.memory_space<vmem>>, vector<8x128xf32>
      tpu.vector_store %arg6[%c0_19, %c0_20], %23 {strides = array<i32>} : memref<8x128xf32, #tpu.memory_space<vmem>>, vector<8x128xf32>,
    } else {
    }
    %c0 = arith.constant 0 : index
    %c0_1 = arith.constant 0 : index
    %3 = vector.load %arg3[%c0, %c0_1] : memref<16x128xf32, #tpu.memory_space<vmem>>, vector<16x128xf32>
    %c0_2 = arith.constant 0 : index
    %c0_3 = arith.constant 0 : index
    %4 = vector.load %arg2[%c0_2, %c0_3] : memref<16x128xf32, #tpu.memory_space<vmem>>, vector<16x128xf32>
    %5 = arith.subf %3, %4 : vector<16x128xf32>
    %6 = arith.mulf %3, %3 : vector<16x128xf32>
    %7 = arith.mulf %5, %5 : vector<16x128xf32>
    %c0_4 = arith.constant 0 : index
    %c0_5 = arith.constant 0 : index
    %8 = vector.load %arg5[%c0_4, %c0_5] : memref<8x128xf32, #tpu.memory_space<vmem>>, vector<8x128xf32>
    %9 = vector.shape_cast %6 : vector<16x128xf32> to vector<2x8x128xf32>
    %cst = arith.constant dense<0.000000e+00> : vector<8x128xf32>
    %10 = vector.multi_reduction <add>, %9, %cst [0] : vector<2x8x128xf32> to vector<8x128xf32>
    %11 = arith.addf %8, %10 : vector<8x128xf32>
    %c0_6 = arith.constant 0 : index
    %c0_7 = arith.constant 0 : index
    %12 = vector.load %arg5[%c0_6, %c0_7] : memref<8x128xf32, #tpu.memory_space<vmem>>, vector<8x128xf32>
    tpu.vector_store %arg5[%c0_6, %c0_7], %11 {strides = array<i32>} : memref<8x128xf32, #tpu.memory_space<vmem>>, vector<8x128xf32>,
    %c0_8 = arith.constant 0 : index
    %c0_9 = arith.constant 0 : index
    %13 = vector.load %arg6[%c0_8, %c0_9] : memref<8x128xf32, #tpu.memory_space<vmem>>, vector<8x128xf32>
    %14 = vector.shape_cast %7 : vector<16x128xf32> to vector<2x8x128xf32>
    %cst_10 = arith.constant dense<0.000000e+00> : vector<8x128xf32>
    %15 = vector.multi_reduction <add>, %14, %cst_10 [0] : vector<2x8x128xf32> to vector<8x128xf32>
    %16 = arith.addf %13, %15 : vector<8x128xf32>
    %c0_11 = arith.constant 0 : index
    %c0_12 = arith.constant 0 : index
    %17 = vector.load %arg6[%c0_11, %c0_12] : memref<8x128xf32, #tpu.memory_space<vmem>>, vector<8x128xf32>
    tpu.vector_store %arg6[%c0_11, %c0_12], %16 {strides = array<i32>} : memref<8x128xf32, #tpu.memory_space<vmem>>, vector<8x128xf32>,
    %c0_i32_13 = arith.constant 0 : i32
    %18 = arith.cmpi eq, %arg1, %c0_i32_13 : i32
    %19 = arith.extui %18 : i1 to i32
    %c0_i32_14 = arith.constant 0 : i32
    %20 = arith.cmpi ne, %19, %c0_i32_14 : i32
    scf.if %20 {
      %c0_15 = arith.constant 0 : index
      %c0_16 = arith.constant 0 : index
      %21 = vector.load %arg5[%c0_15, %c0_16] : memref<8x128xf32, #tpu.memory_space<vmem>>, vector<8x128xf32>
      %c0_17 = arith.constant 0 : index
      %c0_18 = arith.constant 0 : index
      %c0_19 = arith.constant 0 : index
      %c0_20 = arith.constant 0 : index
      %22 = vector.load %arg4[%c0_17, %c0_18, %c0_19, %c0_20] : memref<1x2x8x128xf32, #tpu.memory_space<vmem>>, vector<1x1x8x128xf32>
      %23 = vector.shape_cast %22 : vector<1x1x8x128xf32> to vector<8x128xf32>
      %24 = vector.shape_cast %21 : vector<8x128xf32> to vector<1x1x8x128xf32>
      tpu.vector_store %arg4[%c0_17, %c0_18, %c0_19, %c0_20], %24 {strides = array<i32>} : memref<1x2x8x128xf32, #tpu.memory_space<vmem>>, vector<1x1x8x128xf32>,
      %c0_21 = arith.constant 0 : index
      %c0_22 = arith.constant 0 : index
      %25 = vector.load %arg6[%c0_21, %c0_22] : memref<8x128xf32, #tpu.memory_space<vmem>>, vector<8x128xf32>
      %c0_23 = arith.constant 0 : index
      %c1 = arith.constant 1 : index
      %c0_24 = arith.constant 0 : index
      %c0_25 = arith.constant 0 : index
      %26 = vector.load %arg4[%c0_23, %c1, %c0_24, %c0_25] : memref<1x2x8x128xf32, #tpu.memory_space<vmem>>, vector<1x1x8x128xf32>
      %27 = vector.shape_cast %26 : vector<1x1x8x128xf32> to vector<8x128xf32>
      %28 = vector.shape_cast %25 : vector<8x128xf32> to vector<1x1x8x128xf32>
      tpu.vector_store %arg4[%c0_23, %c1, %c0_24, %c0_25], %28 {strides = array<i32>} : memref<1x2x8x128xf32, #tpu.memory_space<vmem>>, vector<1x1x8x128xf32>,
    } else {
    }
    return
  }
  func.func @transform_0(%arg0: i32, %arg1: i32) -> (i32, i32) {
    %c1_i32 = arith.constant 1 : i32
    %0 = arith.muli %arg0, %c1_i32 : i32
    %1 = arith.addi %0, %arg1 : i32
    %c0_i32 = arith.constant 0 : i32
    %c0_i32_0 = arith.constant 0 : i32
    return %1, %c0_i32 : i32, i32
  }
  func.func @transform_1(%arg0: i32, %arg1: i32) -> (i32, i32) {
    %c1_i32 = arith.constant 1 : i32
    %0 = arith.muli %arg0, %c1_i32 : i32
    %1 = arith.addi %0, %arg1 : i32
    %c0_i32 = arith.constant 0 : i32
    %c0_i32_0 = arith.constant 0 : i32
    return %1, %c0_i32 : i32, i32
  }
  func.func @transform_2(%arg0: i32, %arg1: i32) -> (i32, i32, i32, i32) {
    %c0_i32 = arith.constant 0 : i32
    %c0_i32_0 = arith.constant 0 : i32
    %c0_i32_1 = arith.constant 0 : i32
    %c0_i32_2 = arith.constant 0 : i32
    return %arg0, %c0_i32, %c0_i32_0, %c0_i32_1 : i32, i32, i32, i32
  }
}

</mosaic_0001>

<llo_original>
// kernel: nmse_loss.1
$region0: #{nmse_loss.1}
  #allocation0 [shape = 'u32[]', space=smem, size = 0x4, offset = 0x4, fixed_abs, tag = 'smem constant byte address 0x4 - core index']
  #allocation1 [shape = 'u32[72,128]{1,0:T(1,128)}', space=vmem, size = 0x9000, scoped, tag = 'internal scratch']
  #allocation2 [shape = 'f32[8,128]{1,0:T(8,128)}', space=vmem, size = 0x1000, scoped, tag = 'scratch operand']
  #allocation3 [shape = 'f32[8,128]{1,0:T(8,128)}', space=vmem, size = 0x1000, scoped, tag = 'scratch operand']
  %s0 = inlined_call_operand.vmem [shape: f32[16,128], index: 0, kind: input, shape index: {}]
  %s1 = inlined_call_operand.vmem [shape: f32[16,128], index: 1, kind: input, shape index: {}]
  %s2 = inlined_call_operand.vmem [shape: f32[1,2,8,128], index: 2, kind: output, shape index: {}]
  %s3 = sld [smem:[#allocation0]]
  $region26: #{nmse_loss.1} parent=0
    _
  %s5 = ssub.s32 1, %s3
  %s6 = scalar_select 0, %s5, %s3
  // Predicated region
  $region2: #{nmse_loss.1} parent=0 // pred_check
    _
  $region3: #{nmse_loss.1} parent=0 // pred_check_branch
    %8 = sbr.rel (0) target = $region5
  $region4: #{nmse_loss.1} parent=0 // pred_region
    %s9 = sadd.s32 0, 0
    %s10 = smul.u32 2, %s9
    %p11 = scmp.lt.s32.totalorder %s10, 1
    %s12 = scalar_select %p11, %s10, 1
    %s13 = smul.addr %s12, 8
    %s14 = scalar_lea.vmem %s0, %s13
    %s15 = sadd.s32 0, 0
    %s16 = smul.u32 2, %s15
  $region5: #{nmse_loss.1} parent=0 // pred_fallthru
    _
  // Predicated region
  $region6: #{nmse_loss.1} parent=0 // pred_check
    _
  $region7: #{nmse_loss.1} parent=0 // pred_check_branch
    %18 = sbr.rel (0) target = $region9
  $region8: #{nmse_loss.1} parent=0 // pred_region
    %s19 = sadd.s32 0, 0
    %s20 = smul.u32 2, %s19
    %p21 = scmp.lt.s32.totalorder %s20, 1
    %s22 = scalar_select %p21, %s20, 1
    %s23 = smul.addr %s22, 8
    %s24 = scalar_lea.vmem %s1, %s23
    %s25 = sadd.s32 0, 0
    %s26 = smul.u32 2, %s25
  $region9: #{nmse_loss.1} parent=0 // pred_fallthru
    _
  %s27 = sadd.s32 0, 0
  %s28 = smul.u32 2, %s27
  %p29 = scmp.lt.s32.totalorder %s28, 1
  %s30 = scalar_select %p29, %s28, 1
  %s31 = smul.addr %s30, 8
  %s32 = scalar_lea.vmem %s0, %s31
  %s33 = sadd.s32 0, 0
  %s34 = smul.u32 2, %s33
  %p35 = scmp.lt.s32.totalorder %s34, 1
  %s36 = scalar_select %p35, %s34, 1
  %s37 = smul.addr %s36, 8
  %s38 = scalar_lea.vmem %s1, %s37
  %s39 = sadd.s32 0, 0
  %s40 = smul.u32 2, %s39
  %p41 = scmp.lt.s32.totalorder %s40, 1
  %s42 = scalar_select %p41, %s40, 1
  %s43 = smul.addr %s42, 8
  %s44 = scalar_lea.vmem %s0, %s43
  %s45 = sadd.s32 0, 0
  %s46 = smul.u32 2, %s45
  %s47 = sadd.s32 0, 0
  %s48 = smul.u32 2, %s47
  %p49 = scmp.lt.s32.totalorder %s48, 1
  %s50 = scalar_select %p49, %s48, 1
  %s51 = smul.addr %s50, 8
  %s52 = scalar_lea.vmem %s1, %s51
  %s53 = sadd.s32 0, 0
  %s54 = smul.u32 2, %s53
  %p55 = scmp.eq.s32.totalorder 0, 0
  // Predicated region
  $region10: #{nmse_loss.1} parent=0 // pred_check
    %p56 = pneg %p55
  $region11: #{nmse_loss.1} parent=0 // pred_check_branch
    %58 = sbr.rel (%p56) target = $region13
  $region12: #{nmse_loss.1} parent=0 // pred_region
    %59 = vst [vmem:[#allocation2] sm:$0xff] 0.0
    %60 = vst [vmem:[#allocation3] sm:$0xff] 0.0
  $region13: #{nmse_loss.1} parent=0 // pred_fallthru
    _
  %v61 = vld [vmem:[%s52] sm:$0xff]
  %v62 = vld [vmem:[%s52 + $0x8] sm:$0xff]
  %v63 = vld [vmem:[%s44] sm:$0xff]
  %v64 = vld [vmem:[%s44 + $0x8] sm:$0xff]
  %v65 = vsub.f32 %v61, %v63
  %v66 = vsub.f32 %v62, %v64
  %v67 = vmul.f32 %v61, %v61
  %v68 = vmul.f32 %v62, %v62
  %v69 = vmul.f32 %v65, %v65
  %v70 = vmul.f32 %v66, %v66
  %v71 = vld [vmem:[#allocation2] sm:$0xff]
  %v72 = vadd.f32 %v67, %v68
  %v73 = vadd.f32 %v71, %v72
  %74 = vst [vmem:[#allocation2] sm:$0xff] %v73
  %v75 = vld [vmem:[#allocation3] sm:$0xff]
  %v76 = vadd.f32 %v69, %v70
  %v77 = vadd.f32 %v75, %v76
  %78 = vst [vmem:[#allocation3] sm:$0xff] %v77
  // Predicated region
  $region14: #{nmse_loss.1} parent=0 // pred_check
    %p79 = pneg %p55
  $region15: #{nmse_loss.1} parent=0 // pred_check_branch
    %81 = sbr.rel (%p79) target = $region17
  $region16: #{nmse_loss.1} parent=0 // pred_region
    %v82 = vld [vmem:[#allocation2] sm:$0xff]
    %83 = vst [vmem:[%s2] sm:$0xff] %v82
    %v84 = vld [vmem:[#allocation3] sm:$0xff]
    %s85 = scalar_lea.vmem %s2, 8
    %86 = vst [vmem:[%s85] sm:$0xff] %v84
  $region17: #{nmse_loss.1} parent=0 // pred_fallthru
    _
  // Predicated region
  $region18: #{nmse_loss.1} parent=0 // pred_check
    _
  $region19: #{nmse_loss.1} parent=0 // pred_check_branch
    %88 = sbr.rel (0) target = $region21
  $region20: #{nmse_loss.1} parent=0 // pred_region
    _
  $region21: #{nmse_loss.1} parent=0 // pred_fallthru
    _
  // Predicated region
  $region22: #{nmse_loss.1} parent=0 // pred_check
    _
  $region23: #{nmse_loss.1} parent=0 // pred_check_branch
    %90 = sbr.rel (0) target = $region25
  $region24: #{nmse_loss.1} parent=0 // pred_region
    _
  $region25: #{nmse_loss.1} parent=0 // pred_fallthru
    _

</llo_original>
